<compile_context>
chip_gen: v5e
topology: v5e:2x2
jax: 0.10.0
libtpu: 0.0.40
codegen_flags: <defaults>
</compile_context>

<pallas_src>
from functools import partial

import numpy as np
import jax
import jax.numpy as jnp
from jax import lax
from jax.experimental import pallas as pl
from jax.experimental.pallas import tpu as pltpu


LANE = 128
TARGET_BLOCK_BYTES = 4 * 1024 * 1024      # ~4 MiB f32 working tile
VMEM_LIMIT_BYTES = 32 * 1024 * 1024       # < physical VMEM on v5e/v6e/v7x
MAX_AUTO_LEVELS = 64                      # slots for auto-discovered levels


def _hist_kernel(levels_ref, nlev_ref, x_ref, counts_ref, *, total_rows, needs_mask):
    """Accumulate per-level, per-lane match counts of the current x tile.

    levels_ref : SMEM f32[num_slots]    candidate values (pad slots = NaN)
    nlev_ref   : SMEM i32[1]            number of real levels (loop bound)
    x_ref      : VMEM (tile_rows, C)    lane-dense tile of the flattened input
    counts_ref : VMEM i32[num_slots, C] resident accumulator across the grid
    """
    step = pl.program_id(0)

    @pl.when(step == 0)
    def _init():
        counts_ref[...] = jnp.zeros_like(counts_ref)

    x = x_ref[...].astype(jnp.float32)
    tile_rows = x_ref.shape[0]

    if needs_mask:
        # Partial last block: rows past the logical end hold unspecified data.
        # Turn them into NaN, which never compares equal to any level.
        row_ids = step * tile_rows + lax.broadcasted_iota(jnp.int32, x.shape, 0)
        x = jnp.where(row_ids < total_rows, x, jnp.nan)

    num_slots, ccols = counts_ref.shape
    slot_iota = lax.broadcasted_iota(jnp.int32, (num_slots, ccols), 0)  # hoisted

    def body(u, acc):
        lev = levels_ref[u]                                      # SMEM scalar read
        match = (x == lev).astype(jnp.int32)                     # (tile_rows, C)
        partial_cnt = jnp.sum(match, axis=0, keepdims=True)      # (1, C) per-lane
        # Scatter the per-lane partial count into row `u` of the accumulator
        # without any dynamic-offset stores (pure vector select).
        return acc + jnp.where(slot_iota == u, partial_cnt, 0)

    tile_counts = lax.fori_loop(0, nlev_ref[0], body,
                                jnp.zeros((num_slots, ccols), jnp.int32))
    counts_ref[...] = counts_ref[...] + tile_counts


def _round_up(v, m):
    return -(-v // m) * m


def _largest_divisor_leq(n, cap):
    for c in range(min(cap, n), 0, -1):
        if n % c == 0:
            return c
    return 1


def _count_levels_on_device(x, levels_f32, nlev):
    """Run the Pallas histogram kernel; returns (num_slots,) int32 counts."""
    n = int(np.prod(x.shape))
    num_slots = int(levels_f32.shape[0])

    # Lane-dense presentation: metadata-only reshape when n % 128 == 0 (the
    # usual CNN-activation case).  Ragged sizes use the widest exact divisor
    # <= 128 (no jnp.pad, no extra HBM copy of x).
    # TODO(synk): a prime-sized n degenerates to (n, 1) which is correct but
    #             not lane-dense.
    ccols = LANE if n % LANE == 0 else _largest_divisor_leq(n, LANE)
    rows = n // ccols
    x2d = x.reshape(rows, ccols)

    # Tile sized so the in-kernel f32 working tile is ~4 MiB regardless of the
    # input dtype; double-buffered input + temps stay well under the 32 MiB
    # vmem limit we request (and under v5e's 16 MiB scoped default anyway).
    max_rows = max(8, (TARGET_BLOCK_BYTES // (ccols * 4)) // 8 * 8)
    tile_rows = rows if rows <= max_rows else max_rows
    grid_len = -(-rows // tile_rows)
    needs_mask = (rows % tile_rows) != 0

    nlev_arr = jnp.reshape(jnp.asarray(nlev, dtype=jnp.int32), (1,))

    kernel = partial(_hist_kernel, total_rows=rows, needs_mask=needs_mask)
    counts2d = pl.pallas_call(
        kernel,
        out_shape=jax.ShapeDtypeStruct((num_slots, ccols), jnp.int32),
        grid_spec=pltpu.PrefetchScalarGridSpec(
            num_scalar_prefetch=0,
            grid=(grid_len,),
            in_specs=[
                pl.BlockSpec(memory_space=pltpu.MemorySpace.SMEM),   # levels
                pl.BlockSpec(memory_space=pltpu.MemorySpace.SMEM),   # nlev
                pl.BlockSpec((tile_rows, ccols), lambda i: (i, 0)),  # x tile
            ],
            out_specs=pl.BlockSpec((num_slots, ccols), lambda i: (0, 0)),
        ),
        compiler_params=pltpu.CompilerParams(
            # Reduction into a resident output block -> must be 'arbitrary'.
            dimension_semantics=("arbitrary",),
            vmem_limit_bytes=VMEM_LIMIT_BYTES,
        ),
    )(levels_f32, nlev_arr, x2d)

    # Reduce the per-lane partials on device; only num_slots ints go to host.
    return jnp.sum(counts2d, axis=1)


def _compute_distribution(x, levels=None, max_auto_levels=MAX_AUTO_LEVELS):
    """On-device value histogram of x. Returns (levels_f32, counts) device arrays."""
    max_auto_levels = _round_up(max_auto_levels, 8)
    flat = x.reshape(-1)

    if levels is None:
        # Discover the distinct values on device (bounded); pad slots are NaN
        # so they never match and count 0.
        lv = jnp.unique(flat.astype(jnp.float32), size=max_auto_levels,
                        fill_value=np.nan)
        nlev = jnp.sum(jnp.logical_not(jnp.isnan(lv)))
    else:
        lv_np = np.asarray(levels, dtype=np.float32).reshape(-1)
        num = int(lv_np.size)
        pad = _round_up(max(num, 1), 8) - num
        lv_np = np.concatenate([lv_np, np.full((pad,), np.nan, np.float32)])
        lv = jnp.asarray(lv_np)
        nlev = num

    counts = _count_levels_on_device(x, lv, nlev)
    return lv, counts


def printlayer_forward(x, min_val=0.0, max_val=1.0, levels=None, do_print=True):
    """Pallas equivalent of printlayer.forward.

    Returns x unchanged (the PyTorch module returns its input; no copy is
    made, which is the fastest possible identity).  Side effect: prints the
    {value: count} distribution, computed on device by the Pallas reduction
    kernel so only O(num_levels) bytes cross the host link.
    """
    del min_val, max_val  # unused by the original forward as well
    if do_print:
        lv, cnt = _compute_distribution(x, levels=levels)
        lv_h = np.asarray(jax.device_get(lv))
        cnt_h = np.asarray(jax.device_get(cnt))
        result = {}
        for v, c in zip(lv_h.tolist(), cnt_h.tolist()):
            if c > 0:                       # pad slots (NaN levels) count 0
                result[float(v)] = int(c)
        print('dis =', result)
    return x


if __name__ == "__main__":
    key = jax.random.PRNGKey(0)
    # Small CIFAR-like activation: batch=2, channels=4, spatial=16x16, with a
    # few discrete values so the printed distribution is meaningful.
    x = jax.random.randint(key, (2, 4, 16, 16), 0, 4).astype(jnp.float32) * 0.25

    y = printlayer_forward(x, min_val=0.0, max_val=1.0, do_print=True)
    y = jax.block_until_ready(y)

    # forward is an exact identity (same array, no copy)
    assert y is x and y.shape == x.shape and y.dtype == x.dtype

    # Check the on-device Pallas histogram against a host numpy reference.
    lv, cnt = _compute_distribution(x)
    lv_h = np.asarray(jax.device_get(lv))
    cnt_h = np.asarray(jax.device_get(cnt))
    got = {float(v): int(c) for v, c in zip(lv_h.tolist(), cnt_h.tolist()) if c > 0}
    ref_v, ref_c = np.unique(np.asarray(jax.device_get(x)).ravel(), return_counts=True)
    ref = {float(v): int(c) for v, c in zip(ref_v.tolist(), ref_c.tolist())}
    assert got == ref, (got, ref)

    print("KERNEL_OK")
</pallas_src>

<mosaic_0001>
module attributes {stable_mosaic.version = 11 : i64} {
  func.func @_hist_kernel(%arg0: i32, %arg1: memref<64xf32, #tpu.memory_space<smem>>, %arg2: memref<1xi32, #tpu.memory_space<smem>>, %arg3: memref<16x128xf32, #tpu.memory_space<vmem>>, %arg4: memref<64x128xi32, #tpu.memory_space<vmem>>) attributes {dimension_semantics = [#tpu.dimension_semantics<arbitrary>], iteration_bounds = array<i64: 1>, scalar_prefetch = 0 : i64, scratch_operands = 0 : i64, tpu.core_type = #tpu.core_type<tc>, window_params = [{transform_indices = @transform_0, window_bounds = array<i64: 64>}, {transform_indices = @transform_1, window_bounds = array<i64: 1>}, {transform_indices = @transform_2, window_bounds = array<i64: 16, 128>}, {pipeline_mode = #tpu.pipeline_mode<synchronous>, transform_indices = @transform_3, window_bounds = array<i64: 64, 128>}]} {
    %c0_i32 = arith.constant 0 : i32
    %0 = arith.cmpi eq, %arg0, %c0_i32 : i32
    %1 = arith.extui %0 : i1 to i32
    %c0_i32_0 = arith.constant 0 : i32
    %2 = arith.cmpi ne, %1, %c0_i32_0 : i32
    scf.if %2 {
      %c0_i32_9 = arith.constant 0 : i32
      %13 = vector.broadcast %c0_i32_9 : i32 to vector<64x128xi32>
      %c0_10 = arith.constant 0 : index
      %c0_11 = arith.constant 0 : index
      %14 = vector.load %arg4[%c0_10, %c0_11] : memref<64x128xi32, #tpu.memory_space<vmem>>, vector<64x128xi32>
      tpu.vector_store %arg4[%c0_10, %c0_11], %13 {strides = array<i32>} : memref<64x128xi32, #tpu.memory_space<vmem>>, vector<64x128xi32>,
    } else {
    }
    %c0 = arith.constant 0 : index
    %c0_1 = arith.constant 0 : index
    %3 = vector.load %arg3[%c0, %c0_1] : memref<16x128xf32, #tpu.memory_space<vmem>>, vector<16x128xf32>
    %4 = tpu.iota {dimensions = array<i32: 0>} : vector<64x128xi32>
    %c0_2 = arith.constant 0 : index
    %5 = memref.load %arg2[%c0_2] : memref<1xi32, #tpu.memory_space<smem>>
    %c0_i32_3 = arith.constant 0 : i32
    %6 = vector.broadcast %c0_i32_3 : i32 to vector<64x128xi32>
    %c0_i32_4 = arith.constant 0 : i32
    %7 = arith.subi %5, %c0_i32_4 : i32
    %8 = arith.addi %c0_i32_4, %7 : i32
    %c1_i32 = arith.constant 1 : i32
    %9 = scf.for %arg5 = %c0_i32_4 to %8 step %c1_i32 iter_args(%arg6 = %6) -> (vector<64x128xi32>)  : i32 {
      %13 = arith.index_cast %arg5 : i32 to index
      %14 = memref.load %arg1[%13] : memref<64xf32, #tpu.memory_space<smem>>
      %15 = vector.broadcast %14 : f32 to vector<16x128xf32>
      %16 = arith.cmpf oeq, %3, %15 : vector<16x128xf32>
      %17 = arith.extui %16 : vector<16x128xi1> to vector<16x128xi32>
      %cst = arith.constant dense<0> : vector<128xi32>
      %18 = vector.multi_reduction <add>, %17, %cst [0] : vector<16x128xi32> to vector<128xi32>
      %19 = vector.shape_cast %18 : vector<128xi32> to vector<1x128xi32>
      %20 = vector.broadcast %arg5 : i32 to vector<64x128xi32>
      %21 = arith.cmpi eq, %4, %20 : vector<64x128xi32>
      %c0_i32_9 = arith.constant 0 : i32
      %22 = vector.shape_cast %19 : vector<1x128xi32> to vector<1x128xi32>
      %23 = vector.broadcast %22 : vector<1x128xi32> to vector<64x128xi32>
      %24 = vector.broadcast %c0_i32_9 : i32 to vector<64x128xi32>
      %25 = arith.select %21, %23, %24 : vector<64x128xi1>, vector<64x128xi32>
      %26 = arith.addi %arg6, %25 : vector<64x128xi32>
      scf.yield %26 : vector<64x128xi32>
    }
    %c0_5 = arith.constant 0 : index
    %c0_6 = arith.constant 0 : index
    %10 = vector.load %arg4[%c0_5, %c0_6] : memref<64x128xi32, #tpu.memory_space<vmem>>, vector<64x128xi32>
    %11 = arith.addi %10, %9 : vector<64x128xi32>
    %c0_7 = arith.constant 0 : index
    %c0_8 = arith.constant 0 : index
    %12 = vector.load %arg4[%c0_7, %c0_8] : memref<64x128xi32, #tpu.memory_space<vmem>>, vector<64x128xi32>
    tpu.vector_store %arg4[%c0_7, %c0_8], %11 {strides = array<i32>} : memref<64x128xi32, #tpu.memory_space<vmem>>, vector<64x128xi32>,
    return
  }
  func.func @transform_0(%arg0: i32) -> i32 {
    %c0_i32 = arith.constant 0 : i32
    %c0_i32_0 = arith.constant 0 : i32
    return %c0_i32 : i32
  }
  func.func @transform_1(%arg0: i32) -> i32 {
    %c0_i32 = arith.constant 0 : i32
    %c0_i32_0 = arith.constant 0 : i32
    return %c0_i32 : i32
  }
  func.func @transform_2(%arg0: i32) -> (i32, i32) {
    %c0_i32 = arith.constant 0 : i32
    %c0_i32_0 = arith.constant 0 : i32
    return %arg0, %c0_i32 : i32, i32
  }
  func.func @transform_3(%arg0: i32) -> (i32, i32) {
    %c0_i32 = arith.constant 0 : i32
    %c0_i32_0 = arith.constant 0 : i32
    %c0_i32_1 = arith.constant 0 : i32
    return %c0_i32, %c0_i32_0 : i32, i32
  }
}

</mosaic_0001>

<llo_original>
// kernel: tpu_custom_call.1
$region0: #{tpu_custom_call.1}
  #allocation0 [shape = 'u32[]', space=smem, size = 0x4, offset = 0x4, fixed_abs, tag = 'smem constant byte address 0x4 - core index']
  #allocation1 [shape = 'u32[72,128]{1,0:T(1,128)}', space=vmem, size = 0x9000, scoped, tag = 'internal scratch']
  #allocation2 [shape = 's32[1]{0:T(128)S(6)}', space=smem, size = 0x200, scoped, tag = 'scoped memory for tpu_custom_call.1']
  %s0 = inlined_call_operand.vmem [shape: f32[64], index: 0, kind: input, shape index: {}]
  %s1 = inlined_call_operand.<no memory space> [shape: s32[1], index: 1, kind: input, shape index: {}]
  %s2 = inlined_call_operand.hbm [shape: f32[16,128], index: 2, kind: input, shape index: {}]
  %s3 = inlined_call_operand.hbm [shape: s32[64,128], index: 3, kind: output, shape index: {}]
  %s4 = sld [smem:[#allocation0]]
  $region41: #{tpu_custom_call.1} parent=0
    _
  %s6 = ssub.s32 1, %s4
  %s7 = scalar_select 0, %s6, %s4
  %8 = sst [smem:[#allocation2]] %s1
  $region1: #{tpu_custom_call.1} parent=0
    #allocation3 [shape = 'u8[512]{0}', space=smem, size = 0x200, scoped, tag = 'input window, operand 0, single buffered']
    #allocation4 [shape = 's32[1]{0}', space=sflag, size = 0x4, scoped, tag = 'scoped memory for tpu_custom_call.1']
    #allocation5 [shape = 's32[1]{0}', space=sflag, size = 0x4, scoped, tag = 'scoped memory for tpu_custom_call.1']
    #allocation6 [shape = 's32[1]{0}', space=sflag, size = 0x4, scoped, tag = 'scoped memory for tpu_custom_call.1']
    #allocation7 [shape = 'u8[8192]{0}', space=vmem, size = 0x2000, scoped, tag = 'input window, operand 2, single buffered']
    #allocation8 [shape = 'u8[32768]{0}', space=vmem, size = 0x8000, scoped, tag = 'output window, operand 0, single buffered']
    %9 = vsyncpa [#allocation6], 0
    %10 = vsyncpa [#allocation4], 0
    %11 = vsyncpa [#allocation5], 0
    // Predicated region
    $region2: #{tpu_custom_call.1} parent=1 // pred_check
      _
    $region3: #{tpu_custom_call.1} parent=1 // pred_check_branch
      %13 = sbr.rel (0) target = $region5
    $region4: #{tpu_custom_call.1} parent=1 // pred_region
      %15 = vsyncadd [#allocation6], 0
      %s17 = sshll.u32 %s0, 4
      %s18 = int_to_ptr.vmem [resolvable:$true] %s17
      %20 = dma.vmem_to_smem %s18, 16, [#allocation3], [#allocation6]
    $region5: #{tpu_custom_call.1} parent=1 // pred_fallthru
      _
    // Predicated region
    $region6: #{tpu_custom_call.1} parent=1 // pred_check
      _
    $region7: #{tpu_custom_call.1} parent=1 // pred_check_branch
      %22 = sbr.rel (0) target = $region9
    $region8: #{tpu_custom_call.1} parent=1 // pred_region
      _
    $region9: #{tpu_custom_call.1} parent=1 // pred_fallthru
      _
    // Predicated region
    $region10: #{tpu_custom_call.1} parent=1 // pred_check
      _
    $region11: #{tpu_custom_call.1} parent=1 // pred_check_branch
      %24 = sbr.rel (0) target = $region13
    $region12: #{tpu_custom_call.1} parent=1 // pred_region
      %26 = vsyncadd [#allocation4], 0
      %s27 = sshll.u32 %s2, 4
      %s28 = int_to_ptr.hbm [resolvable:$true] %s27
      %s29 = sshll.u32 [#allocation7], 4
      %s30 = int_to_ptr.vmem [resolvable:$true] %s29
      %35 = dma.hbm_to_vmem [thread:$0]  %s28, 256, %s30, [#allocation4], 128, 128, 8
    $region13: #{tpu_custom_call.1} parent=1 // pred_fallthru
      _
    // Predicated region
    $region14: #{tpu_custom_call.1} parent=1 // pred_check
      _
    $region15: #{tpu_custom_call.1} parent=1 // pred_check_branch
      %37 = sbr.rel (0) target = $region17
    $region16: #{tpu_custom_call.1} parent=1 // pred_region
      %39 = dma.done [#allocation6], 16
    $region17: #{tpu_custom_call.1} parent=1 // pred_fallthru
      _
    // Predicated region
    $region18: #{tpu_custom_call.1} parent=1 // pred_check
      _
    $region19: #{tpu_custom_call.1} parent=1 // pred_check_branch
      %41 = sbr.rel (0) target = $region21
    $region20: #{tpu_custom_call.1} parent=1 // pred_region
      %43 = dma.done [#allocation4], 256
    $region21: #{tpu_custom_call.1} parent=1 // pred_fallthru
      _
    %44 = sfence
    %p45 = scmp.eq.s32.totalorder 0, 0
    // Predicated region
    $region22: #{tpu_custom_call.1} parent=1 // pred_check
      %p46 = pneg %p45
    $region23: #{tpu_custom_call.1} parent=1 // pred_check_branch
      %48 = sbr.rel (%p46) target = $region25
    $region24: #{tpu_custom_call.1} parent=1 // pred_region
      %49 = vst [vmem:[#allocation8] sm:$0xff] 0
      %50 = vst [vmem:[#allocation8 + $0x8] sm:$0xff] 0
      %51 = vst [vmem:[#allocation8 + $0x10] sm:$0xff] 0
      %52 = vst [vmem:[#allocation8 + $0x18] sm:$0xff] 0
      %53 = vst [vmem:[#allocation8 + $0x20] sm:$0xff] 0
      %54 = vst [vmem:[#allocation8 + $0x28] sm:$0xff] 0
      %55 = vst [vmem:[#allocation8 + $0x30] sm:$0xff] 0
      %56 = vst [vmem:[#allocation8 + $0x38] sm:$0xff] 0
    $region25: #{tpu_custom_call.1} parent=1 // pred_fallthru
      _
    %v57 = vld [vmem:[#allocation7] sm:$0xff]
    %v58 = vld [vmem:[#allocation7 + $0x8] sm:$0xff]
    %v59 = vlaneseq
    %v60 = vshrl.u32 %v59, 7
    %v61 = vadd.s32 %v60, 8
    %v62 = vadd.s32 %v60, 16
    %v63 = vadd.s32 %v60, 24
    %v64 = vadd.s32 %v60, 32
    %v65 = vadd.s32 %v60, 40
    %v66 = vadd.s32 %v60, 48
    %v67 = vadd.s32 %v60, 56
    %s68 = sld [smem:[#allocation2]]
    // While loop
    $region26: #{tpu_custom_call.1} parent=1 // loop_pre_header
      _
    $region27: #{tpu_custom_call.1} parent=1 // loop_header
      %s70 = sphi 0, %s72
      %p71 = scmp.ge.s32.totalorder %s70, %s68
      %v75 = vphi 0, %v113
      %v76 = vphi 0, %v114
      %v77 = vphi 0, %v115
      %v78 = vphi 0, %v116
      %v79 = vphi 0, %v117
      %v80 = vphi 0, %v118
      %v81 = vphi 0, %v119
      %v82 = vphi 0, %v120
    $region28: #{tpu_custom_call.1} parent=1 // loop_header_branch
      %74 = sbr.rel (%p71) target = $region32
    $region29: #{tpu_custom_call.1} parent=1 // loop_body
      %s83 = sld [smem:[#allocation3 + %s70]]
      %v84 = vstv %s83
      %vm85 = vcmp.eq.f32.partialorder %v57, %v84
      %vm86 = vcmp.eq.f32.partialorder %v58, %v84
      %v87 = vsel %vm85, 1, 0
      %v88 = vsel %vm86, 1, 0
      %v89 = vadd.s32 %v87, %v88
      %v90 = vrot.slane %v89, 4
      %v91 = vadd.s32 %v89, %v90
      %v92 = vrot.slane %v91, 2
      %v93 = vadd.s32 %v91, %v92
      %v94 = vrot.slane %v93, 1
      %v95 = vadd.s32 %v93, %v94
      %v96 = vstv %s70
      %vm97 = vcmp.eq.s32.totalorder %v60, %v96
      %vm98 = vcmp.eq.s32.totalorder %v61, %v96
      %vm99 = vcmp.eq.s32.totalorder %v62, %v96
      %vm100 = vcmp.eq.s32.totalorder %v63, %v96
      %vm101 = vcmp.eq.s32.totalorder %v64, %v96
      %vm102 = vcmp.eq.s32.totalorder %v65, %v96
      %vm103 = vcmp.eq.s32.totalorder %v66, %v96
      %vm104 = vcmp.eq.s32.totalorder %v67, %v96
      %v105 = vsel %vm97, %v95, 0
      %v106 = vsel %vm98, %v95, 0
      %v107 = vsel %vm99, %v95, 0
      %v108 = vsel %vm100, %v95, 0
      %v109 = vsel %vm101, %v95, 0
      %v110 = vsel %vm102, %v95, 0
      %v111 = vsel %vm103, %v95, 0
      %v112 = vsel %vm104, %v95, 0
      %v113 = vadd.s32 %v75, %v105
      %v114 = vadd.s32 %v76, %v106
      %v115 = vadd.s32 %v77, %v107
      %v116 = vadd.s32 %v78, %v108
      %v117 = vadd.s32 %v79, %v109
      %v118 = vadd.s32 %v80, %v110
      %v119 = vadd.s32 %v81, %v111
      %v120 = vadd.s32 %v82, %v112
    $region30: #{tpu_custom_call.1} parent=1 // loop_footer
      %s72 = sadd.s32 %s70, 1
    $region31: #{tpu_custom_call.1} parent=1 // loop_footer_branch
      %69 = sbr.rel target = $region27
    $region32: #{tpu_custom_call.1} parent=1 // loop_exit
      _
    %v121 = vld [vmem:[#allocation8] sm:$0xff]
    %v122 = vld [vmem:[#allocation8 + $0x8] sm:$0xff]
    %v123 = vld [vmem:[#allocation8 + $0x10] sm:$0xff]
    %v124 = vld [vmem:[#allocation8 + $0x18] sm:$0xff]
    %v125 = vld [vmem:[#allocation8 + $0x20] sm:$0xff]
    %v126 = vld [vmem:[#allocation8 + $0x28] sm:$0xff]
    %v127 = vld [vmem:[#allocation8 + $0x30] sm:$0xff]
    %v128 = vld [vmem:[#allocation8 + $0x38] sm:$0xff]
    %v129 = vadd.s32 %v121, %v75
    %v130 = vadd.s32 %v122, %v76
    %v131 = vadd.s32 %v123, %v77
    %v132 = vadd.s32 %v124, %v78
    %v133 = vadd.s32 %v125, %v79
    %v134 = vadd.s32 %v126, %v80
    %v135 = vadd.s32 %v127, %v81
    %v136 = vadd.s32 %v128, %v82
    %137 = vst [vmem:[#allocation8] sm:$0xff] %v129
    %138 = vst [vmem:[#allocation8 + $0x8] sm:$0xff] %v130
    %139 = vst [vmem:[#allocation8 + $0x10] sm:$0xff] %v131
    %140 = vst [vmem:[#allocation8 + $0x18] sm:$0xff] %v132
    %141 = vst [vmem:[#allocation8 + $0x20] sm:$0xff] %v133
    %142 = vst [vmem:[#allocation8 + $0x28] sm:$0xff] %v134
    %143 = vst [vmem:[#allocation8 + $0x30] sm:$0xff] %v135
    %144 = vst [vmem:[#allocation8 + $0x38] sm:$0xff] %v136
    // Predicated region
    $region33: #{tpu_custom_call.1} parent=1 // pred_check
      _
    $region34: #{tpu_custom_call.1} parent=1 // pred_check_branch
      %146 = sbr.rel (0) target = $region36
    $region35: #{tpu_custom_call.1} parent=1 // pred_region
      %148 = vsyncadd [#allocation5], 0
      %s149 = sshll.u32 [#allocation8], 4
      %s150 = int_to_ptr.vmem [resolvable:$true] %s149
      %s151 = sshll.u32 %s3, 4
      %s152 = int_to_ptr.hbm [resolvable:$true] %s151
      %157 = dma.vmem_to_hbm [thread:$0]  %s150, 1024, %s152, [#allocation5], 128, 128, 8
    $region36: #{tpu_custom_call.1} parent=1 // pred_fallthru
      _
    // Predicated region
    $region37: #{tpu_custom_call.1} parent=1 // pred_check
      _
    $region38: #{tpu_custom_call.1} parent=1 // pred_check_branch
      %159 = sbr.rel (0) target = $region40
    $region39: #{tpu_custom_call.1} parent=1 // pred_region
      %161 = dma.done [#allocation5], 1024
    $region40: #{tpu_custom_call.1} parent=1 // pred_fallthru
      _
    %162 = vsyncpa [#allocation4], 1
    %163 = vsyncpa [#allocation5], 1
    %164 = vsyncpa [#allocation6], 1

</llo_original>
